<compile_context>
chip_gen: v5e
topology: v5e:2x2
jax: 0.10.0
libtpu: 0.0.40
codegen_flags: <defaults>
</compile_context>

<pallas_src>
import jax
import jax.numpy as jnp
from jax import lax
from jax.experimental import pallas as pl
from jax.experimental.pallas import tpu as pltpu

MIN_CONF = 0.25


def _postprocess_kernel(logits_ref, boxes_ref, sizes_ref,
                        scores_ref, labels_ref, boxes_out_ref):
    # logits_ref: [Bb, C1, Q]  class-major (classes in sublanes, queries in lanes)
    logits = logits_ref[...].astype(jnp.float32)
    c1 = logits.shape[1]

    # Numerically-stable softmax, using monotonicity of exp:
    #   max_fg(softmax) = exp(max_fg(logit) - max_all(logit)) / sum(exp(logit - max_all))
    # so the only full-width EUP op is the exp feeding the denominator.
    m_all = jnp.max(logits, axis=1, keepdims=True)                     # [Bb, 1, Q]
    denom = jnp.sum(jnp.exp(logits - m_all), axis=1, keepdims=True)    # [Bb, 1, Q]

    fg = logits[:, :c1 - 1, :]                                         # drop "no-object"
    m_fg = jnp.max(fg, axis=1, keepdims=True)                          # [Bb, 1, Q]
    scores = jnp.exp(m_fg - m_all) / denom                             # [Bb, 1, Q]

    # First-max argmax over foreground logits (== argmax of softmax probs).
    # m_fg is an exact element of fg, so the equality compare is safe.
    cls_idx = lax.broadcasted_iota(jnp.int32, fg.shape, 1)
    labels = jnp.min(jnp.where(fg >= m_fg, cls_idx, jnp.int32(c1)),
                     axis=1, keepdims=True)                            # [Bb, 1, Q]

    scores_ref[...] = scores
    labels_ref[...] = labels

    # Boxes: cxcywh -> xyxy, scaled by (img_w, img_h, img_w, img_h).
    bx = boxes_ref[...].astype(jnp.float32)                            # [Bb, Q, 4]
    sz = sizes_ref[...]                                                # [Bb, 1, 2] (h, w)
    img_h = sz[:, :, 0:1]                                              # [Bb, 1, 1]
    img_w = sz[:, :, 1:2]
    cx = bx[:, :, 0:1]
    cy = bx[:, :, 1:2]
    w = bx[:, :, 2:3]
    h = bx[:, :, 3:4]
    # Direct sub-slice stores: no concatenated [Bb, Q, 4] temporary.
    boxes_out_ref[:, :, 0:1] = (cx - 0.5 * w) * img_w
    boxes_out_ref[:, :, 1:2] = (cy - 0.5 * h) * img_h
    boxes_out_ref[:, :, 2:3] = (cx + 0.5 * w) * img_w
    boxes_out_ref[:, :, 3:4] = (cy + 0.5 * h) * img_h


def _grid_steps(batch: int) -> int:
    """1 step on single-TC chips (v5e/v6e); 2 parallel steps on 2-TC chips (v7x)."""
    try:
        kind = jax.devices()[0].device_kind.lower()
    except Exception:
        kind = ""
    if batch > 1 and batch % 2 == 0 and "v7" in kind:
        return 2
    return 1


@jax.jit
def post_process(pred_logits, pred_boxes, target_sizes):
    """Dense part of DETR PostProcess.

    Returns (scores [B,Q] f32, labels [B,Q] i32, boxes_xyxy [B,Q,4] f32 scaled
    to image size).  The ragged per-image `score >= min_conf` selection of the
    PyTorch module is host-side glue on these dense outputs.
    """
    B, Q, C1 = pred_logits.shape
    G = _grid_steps(B)
    Bb = B // G

    # Class-major layout for the kernel (lane-dense exp + lane-dense row stores).
    logits_t = jnp.transpose(pred_logits, (0, 2, 1))                   # [B, C1, Q]
    sizes_f = target_sizes.astype(jnp.float32).reshape(B, 1, 2)        # [B, 1, 2]

    out_shapes = (
        jax.ShapeDtypeStruct((B, 1, Q), jnp.float32),    # scores
        jax.ShapeDtypeStruct((B, 1, Q), jnp.int32),      # labels
        jax.ShapeDtypeStruct((B, Q, 4), jnp.float32),    # boxes (xyxy, scaled)
    )
    scores3, labels3, boxes = pl.pallas_call(
        _postprocess_kernel,
        out_shape=out_shapes,
        grid=(G,),
        in_specs=[
            pl.BlockSpec((Bb, C1, Q), lambda g: (g, 0, 0)),   # logits (class-major)
            pl.BlockSpec((Bb, Q, 4), lambda g: (g, 0, 0)),    # boxes (natural layout)
            pl.BlockSpec((Bb, 1, 2), lambda g: (g, 0, 0)),    # per-image (h, w)
        ],
        out_specs=(
            pl.BlockSpec((Bb, 1, Q), lambda g: (g, 0, 0)),
            pl.BlockSpec((Bb, 1, Q), lambda g: (g, 0, 0)),
            pl.BlockSpec((Bb, Q, 4), lambda g: (g, 0, 0)),
        ),
        compiler_params=pltpu.CompilerParams(
            dimension_semantics=("parallel",)),
    )(logits_t, pred_boxes, sizes_f)

    return scores3[:, 0, :], labels3[:, 0, :], boxes


def _reference(pred_logits, pred_boxes, target_sizes):
    prob = jax.nn.softmax(pred_logits, axis=-1)
    scores = jnp.max(prob[..., :-1], axis=-1)
    labels = jnp.argmax(prob[..., :-1], axis=-1).astype(jnp.int32)
    cx, cy, w, h = jnp.split(pred_boxes, 4, axis=-1)
    xyxy = jnp.concatenate([cx - 0.5 * w, cy - 0.5 * h, cx + 0.5 * w, cy + 0.5 * h], -1)
    img_h = target_sizes[:, 0].astype(jnp.float32)
    img_w = target_sizes[:, 1].astype(jnp.float32)
    scale = jnp.stack([img_w, img_h, img_w, img_h], axis=1)
    boxes = xyxy * scale[:, None, :]
    return scores, labels, boxes


if __name__ == "__main__":
    import numpy as np

    B, Q, C1 = 2, 8, 32  # batch, queries, num_classes + 1 ("no-object")
    key = jax.random.PRNGKey(0)
    k1, k2 = jax.random.split(key)
    # bf16 logits halve the dominant HBM read; the kernel upcasts to f32 internally.
    pred_logits = jax.random.normal(k1, (B, Q, C1), dtype=jnp.float32).astype(jnp.bfloat16)
    pred_boxes = jax.nn.sigmoid(jax.random.normal(k2, (B, Q, 4), dtype=jnp.float32))
    target_sizes = jnp.array([[480, 640], [512, 512]], dtype=jnp.int32)  # (h, w)

    scores, labels, boxes = jax.block_until_ready(
        post_process(pred_logits, pred_boxes, target_sizes))

    # Check against a pure-JAX reference (same f32 upcast of the bf16 logits).
    r_scores, r_labels, r_boxes = _reference(
        pred_logits.astype(jnp.float32), pred_boxes, target_sizes)
    np.testing.assert_allclose(np.asarray(scores), np.asarray(r_scores), rtol=1e-5, atol=1e-6)
    np.testing.assert_array_equal(np.asarray(labels), np.asarray(r_labels))
    np.testing.assert_allclose(np.asarray(boxes), np.asarray(r_boxes), rtol=1e-5, atol=1e-3)

    # Ragged per-image filtering (dynamic shapes) is host-side glue, equivalent
    # to the `results` list of dicts built by the PyTorch module.
    # TODO(synk): the variable-length `score >= min_conf` gather has no
    # fixed-shape Pallas equivalent; it stays on the host.
    s_np, l_np, b_np = np.asarray(scores), np.asarray(labels), np.asarray(boxes)
    results = []
    for bi in range(B):
        keep = s_np[bi] >= MIN_CONF
        results.append({
            "scores": s_np[bi][keep],
            "labels": l_np[bi][keep],
            "boxes": b_np[bi][keep],
        })

    print("KERNEL_OK")
</pallas_src>

<mosaic_0001>
module attributes {stable_mosaic.version = 11 : i64} {
  func.func @_postprocess_kernel(%arg0: i32, %arg1: memref<2x32x8xbf16, #tpu.memory_space<vmem>>, %arg2: memref<2x8x4xf32, #tpu.memory_space<vmem>>, %arg3: memref<2x1x2xf32, #tpu.memory_space<vmem>>, %arg4: memref<2x1x8xf32, #tpu.memory_space<vmem>>, %arg5: memref<2x1x8xi32, #tpu.memory_space<vmem>>, %arg6: memref<2x8x4xf32, #tpu.memory_space<vmem>>) attributes {dimension_semantics = [#tpu.dimension_semantics<parallel>], iteration_bounds = array<i64: 1>, scalar_prefetch = 0 : i64, scratch_operands = 0 : i64, tpu.core_type = #tpu.core_type<tc>, window_params = [{transform_indices = @transform_0, window_bounds = array<i64: 2, 32, 8>}, {transform_indices = @transform_1, window_bounds = array<i64: 2, 8, 4>}, {transform_indices = @transform_2, window_bounds = array<i64: 2, 1, 2>}, {transform_indices = @transform_3, window_bounds = array<i64: 2, 1, 8>}, {transform_indices = @transform_4, window_bounds = array<i64: 2, 1, 8>}, {transform_indices = @transform_5, window_bounds = array<i64: 2, 8, 4>}]} {
    %c0 = arith.constant 0 : index
    %c0_0 = arith.constant 0 : index
    %c0_1 = arith.constant 0 : index
    %0 = vector.load %arg1[%c0, %c0_0, %c0_1] : memref<2x32x8xbf16, #tpu.memory_space<vmem>>, vector<2x32x8xbf16>
    %1 = arith.extf %0 : vector<2x32x8xbf16> to vector<2x32x8xf32>
    %cst = arith.constant dense<0xFF800000> : vector<2x8xf32>
    %2 = vector.multi_reduction <maximumf>, %1, %cst [1] : vector<2x32x8xf32> to vector<2x8xf32>
    %3 = vector.shape_cast %2 : vector<2x8xf32> to vector<2x1x8xf32>
    %4 = vector.broadcast %3 : vector<2x1x8xf32> to vector<2x32x8xf32>
    %5 = arith.subf %1, %4 : vector<2x32x8xf32>
    %6 = math.exp %5 : vector<2x32x8xf32>
    %cst_2 = arith.constant dense<0.000000e+00> : vector<2x8xf32>
    %7 = vector.multi_reduction <add>, %6, %cst_2 [1] : vector<2x32x8xf32> to vector<2x8xf32>
    %8 = vector.shape_cast %7 : vector<2x8xf32> to vector<2x1x8xf32>
    %9 = vector.extract_strided_slice %1 {offsets = [0, 0, 0], sizes = [2, 31, 8], strides = [1, 1, 1]} : vector<2x32x8xf32> to vector<2x31x8xf32>
    %cst_3 = arith.constant dense<0xFF800000> : vector<2x8xf32>
    %10 = vector.multi_reduction <maximumf>, %9, %cst_3 [1] : vector<2x31x8xf32> to vector<2x8xf32>
    %11 = vector.shape_cast %10 : vector<2x8xf32> to vector<2x1x8xf32>
    %12 = arith.subf %11, %3 : vector<2x1x8xf32>
    %13 = math.exp %12 : vector<2x1x8xf32>
    %14 = arith.divf %13, %8 : vector<2x1x8xf32>
    %15 = tpu.iota {dimensions = array<i32: 1>} : vector<2x31x8xi32>
    %16 = vector.broadcast %11 : vector<2x1x8xf32> to vector<2x31x8xf32>
    %17 = arith.cmpf oge, %9, %16 : vector<2x31x8xf32>
    %c32_i32 = arith.constant 32 : i32
    %18 = vector.broadcast %c32_i32 : i32 to vector<2x31x8xi32>
    %19 = arith.select %17, %15, %18 : vector<2x31x8xi1>, vector<2x31x8xi32>
    %cst_4 = arith.constant dense<2147483647> : vector<2x8xi32>
    %20 = vector.multi_reduction <minsi>, %19, %cst_4 [1] : vector<2x31x8xi32> to vector<2x8xi32>
    %21 = vector.shape_cast %20 : vector<2x8xi32> to vector<2x1x8xi32>
    %c0_5 = arith.constant 0 : index
    %c0_6 = arith.constant 0 : index
    %c0_7 = arith.constant 0 : index
    %22 = vector.load %arg4[%c0_5, %c0_6, %c0_7] : memref<2x1x8xf32, #tpu.memory_space<vmem>>, vector<2x1x8xf32>
    tpu.vector_store %arg4[%c0_5, %c0_6, %c0_7], %14 {strides = array<i32>} : memref<2x1x8xf32, #tpu.memory_space<vmem>>, vector<2x1x8xf32>,
    %c0_8 = arith.constant 0 : index
    %c0_9 = arith.constant 0 : index
    %c0_10 = arith.constant 0 : index
    %23 = vector.load %arg5[%c0_8, %c0_9, %c0_10] : memref<2x1x8xi32, #tpu.memory_space<vmem>>, vector<2x1x8xi32>
    tpu.vector_store %arg5[%c0_8, %c0_9, %c0_10], %21 {strides = array<i32>} : memref<2x1x8xi32, #tpu.memory_space<vmem>>, vector<2x1x8xi32>,
    %c0_11 = arith.constant 0 : index
    %c0_12 = arith.constant 0 : index
    %c0_13 = arith.constant 0 : index
    %24 = vector.load %arg2[%c0_11, %c0_12, %c0_13] : memref<2x8x4xf32, #tpu.memory_space<vmem>>, vector<2x8x4xf32>
    %c0_14 = arith.constant 0 : index
    %c0_15 = arith.constant 0 : index
    %c0_16 = arith.constant 0 : index
    %25 = vector.load %arg3[%c0_14, %c0_15, %c0_16] : memref<2x1x2xf32, #tpu.memory_space<vmem>>, vector<2x1x2xf32>
    %26 = vector.extract_strided_slice %25 {offsets = [0, 0, 0], sizes = [2, 1, 1], strides = [1, 1, 1]} : vector<2x1x2xf32> to vector<2x1x1xf32>
    %27 = vector.extract_strided_slice %25 {offsets = [0, 0, 1], sizes = [2, 1, 1], strides = [1, 1, 1]} : vector<2x1x2xf32> to vector<2x1x1xf32>
    %28 = vector.extract_strided_slice %24 {offsets = [0, 0, 0], sizes = [2, 8, 1], strides = [1, 1, 1]} : vector<2x8x4xf32> to vector<2x8x1xf32>
    %29 = vector.extract_strided_slice %24 {offsets = [0, 0, 1], sizes = [2, 8, 1], strides = [1, 1, 1]} : vector<2x8x4xf32> to vector<2x8x1xf32>
    %30 = vector.extract_strided_slice %24 {offsets = [0, 0, 2], sizes = [2, 8, 1], strides = [1, 1, 1]} : vector<2x8x4xf32> to vector<2x8x1xf32>
    %31 = vector.extract_strided_slice %24 {offsets = [0, 0, 3], sizes = [2, 8, 1], strides = [1, 1, 1]} : vector<2x8x4xf32> to vector<2x8x1xf32>
    %cst_17 = arith.constant 5.000000e-01 : f32
    %32 = vector.broadcast %cst_17 : f32 to vector<2x8x1xf32>
    %33 = arith.mulf %32, %30 : vector<2x8x1xf32>
    %34 = arith.subf %28, %33 : vector<2x8x1xf32>
    %35 = vector.broadcast %27 : vector<2x1x1xf32> to vector<2x8x1xf32>
    %36 = arith.mulf %34, %35 : vector<2x8x1xf32>
    %c0_18 = arith.constant 0 : index
    %c0_19 = arith.constant 0 : index
    %c0_20 = arith.constant 0 : index
    %37 = vector.load %arg6[%c0_18, %c0_19, %c0_20] : memref<2x8x4xf32, #tpu.memory_space<vmem>>, vector<2x8x1xf32>
    tpu.vector_store %arg6[%c0_18, %c0_19, %c0_20], %36 {strides = array<i32>} : memref<2x8x4xf32, #tpu.memory_space<vmem>>, vector<2x8x1xf32>,
    %cst_21 = arith.constant 5.000000e-01 : f32
    %38 = vector.broadcast %cst_21 : f32 to vector<2x8x1xf32>
    %39 = arith.mulf %38, %31 : vector<2x8x1xf32>
    %40 = arith.subf %29, %39 : vector<2x8x1xf32>
    %41 = vector.broadcast %26 : vector<2x1x1xf32> to vector<2x8x1xf32>
    %42 = arith.mulf %40, %41 : vector<2x8x1xf32>
    %c0_22 = arith.constant 0 : index
    %c0_23 = arith.constant 0 : index
    %c1 = arith.constant 1 : index
    %43 = vector.load %arg6[%c0_22, %c0_23, %c1] : memref<2x8x4xf32, #tpu.memory_space<vmem>>, vector<2x8x1xf32>
    tpu.vector_store %arg6[%c0_22, %c0_23, %c1], %42 {strides = array<i32>} : memref<2x8x4xf32, #tpu.memory_space<vmem>>, vector<2x8x1xf32>,
    %cst_24 = arith.constant 5.000000e-01 : f32
    %44 = vector.broadcast %cst_24 : f32 to vector<2x8x1xf32>
    %45 = arith.mulf %44, %30 : vector<2x8x1xf32>
    %46 = arith.addf %28, %45 : vector<2x8x1xf32>
    %47 = vector.broadcast %27 : vector<2x1x1xf32> to vector<2x8x1xf32>
    %48 = arith.mulf %46, %47 : vector<2x8x1xf32>
    %c0_25 = arith.constant 0 : index
    %c0_26 = arith.constant 0 : index
    %c2 = arith.constant 2 : index
    %49 = vector.load %arg6[%c0_25, %c0_26, %c2] : memref<2x8x4xf32, #tpu.memory_space<vmem>>, vector<2x8x1xf32>
    tpu.vector_store %arg6[%c0_25, %c0_26, %c2], %48 {strides = array<i32>} : memref<2x8x4xf32, #tpu.memory_space<vmem>>, vector<2x8x1xf32>,
    %cst_27 = arith.constant 5.000000e-01 : f32
    %50 = vector.broadcast %cst_27 : f32 to vector<2x8x1xf32>
    %51 = arith.mulf %50, %31 : vector<2x8x1xf32>
    %52 = arith.addf %29, %51 : vector<2x8x1xf32>
    %53 = vector.broadcast %26 : vector<2x1x1xf32> to vector<2x8x1xf32>
    %54 = arith.mulf %52, %53 : vector<2x8x1xf32>
    %c0_28 = arith.constant 0 : index
    %c0_29 = arith.constant 0 : index
    %c3 = arith.constant 3 : index
    %55 = vector.load %arg6[%c0_28, %c0_29, %c3] : memref<2x8x4xf32, #tpu.memory_space<vmem>>, vector<2x8x1xf32>
    tpu.vector_store %arg6[%c0_28, %c0_29, %c3], %54 {strides = array<i32>} : memref<2x8x4xf32, #tpu.memory_space<vmem>>, vector<2x8x1xf32>,
    return
  }
  func.func @transform_0(%arg0: i32) -> (i32, i32, i32) {
    %c0_i32 = arith.constant 0 : i32
    %c0_i32_0 = arith.constant 0 : i32
    %c0_i32_1 = arith.constant 0 : i32
    return %arg0, %c0_i32, %c0_i32_0 : i32, i32, i32
  }
  func.func @transform_1(%arg0: i32) -> (i32, i32, i32) {
    %c0_i32 = arith.constant 0 : i32
    %c0_i32_0 = arith.constant 0 : i32
    %c0_i32_1 = arith.constant 0 : i32
    return %arg0, %c0_i32, %c0_i32_0 : i32, i32, i32
  }
  func.func @transform_2(%arg0: i32) -> (i32, i32, i32) {
    %c0_i32 = arith.constant 0 : i32
    %c0_i32_0 = arith.constant 0 : i32
    %c0_i32_1 = arith.constant 0 : i32
    return %arg0, %c0_i32, %c0_i32_0 : i32, i32, i32
  }
  func.func @transform_3(%arg0: i32) -> (i32, i32, i32) {
    %c0_i32 = arith.constant 0 : i32
    %c0_i32_0 = arith.constant 0 : i32
    %c0_i32_1 = arith.constant 0 : i32
    return %arg0, %c0_i32, %c0_i32_0 : i32, i32, i32
  }
  func.func @transform_4(%arg0: i32) -> (i32, i32, i32) {
    %c0_i32 = arith.constant 0 : i32
    %c0_i32_0 = arith.constant 0 : i32
    %c0_i32_1 = arith.constant 0 : i32
    return %arg0, %c0_i32, %c0_i32_0 : i32, i32, i32
  }
  func.func @transform_5(%arg0: i32) -> (i32, i32, i32) {
    %c0_i32 = arith.constant 0 : i32
    %c0_i32_0 = arith.constant 0 : i32
    %c0_i32_1 = arith.constant 0 : i32
    return %arg0, %c0_i32, %c0_i32_0 : i32, i32, i32
  }
}

</mosaic_0001>

<llo_original>
// kernel: post_process.1
$region0: #{post_process.1}
  #allocation0 [shape = 'u32[]', space=smem, size = 0x4, offset = 0x4, fixed_abs, tag = 'smem constant byte address 0x4 - core index']
  #allocation1 [shape = 'u32[72,128]{1,0:T(1,128)}', space=vmem, size = 0x9000, scoped, tag = 'internal scratch']
  %s0 = inlined_call_operand.vmem [shape: bf16[2,32,8], index: 0, kind: input, shape index: {}]
  %s1 = inlined_call_operand.vmem [shape: f32[2,8,4], index: 1, kind: input, shape index: {}]
  %s2 = inlined_call_operand.vmem [shape: f32[2,1,2], index: 2, kind: input, shape index: {}]
  %s3 = inlined_call_operand.hbm [shape: f32[2,1,8], index: 3, kind: output, shape index: {0}]
  %s4 = inlined_call_operand.hbm [shape: s32[2,1,8], index: 4, kind: output, shape index: {1}]
  %s5 = inlined_call_operand.vmem [shape: f32[2,8,4], index: 5, kind: output, shape index: {2}]
  %6 = xla_tuple %s3, %s4, %s5
  %s7 = sld [smem:[#allocation0]]
  $region38: #{post_process.1} parent=0
    _
  %s9 = ssub.s32 1, %s7
  %s10 = scalar_select 0, %s9, %s7
  $region1: #{post_process.1} parent=0
    #allocation2 [shape = 'u8[1024]{0}', space=vmem, size = 0x400, scoped, tag = 'output window, operand 0, single buffered']
    #allocation3 [shape = 's32[1]{0}', space=sflag, size = 0x4, scoped, tag = 'scoped memory for post_process.1']
    #allocation4 [shape = 'u8[1024]{0}', space=vmem, size = 0x400, scoped, tag = 'output window, operand 1, single buffered']
    #allocation5 [shape = 's32[1]{0}', space=sflag, size = 0x4, scoped, tag = 'scoped memory for post_process.1']
    %11 = vsyncpa [#allocation3], 0
    %12 = vsyncpa [#allocation5], 0
    // Predicated region
    $region2: #{post_process.1} parent=1 // pred_check
      _
    $region3: #{post_process.1} parent=1 // pred_check_branch
      %14 = sbr.rel (0) target = $region5
    $region4: #{post_process.1} parent=1 // pred_region
      _
    $region5: #{post_process.1} parent=1 // pred_fallthru
      _
    // Predicated region
    $region6: #{post_process.1} parent=1 // pred_check
      _
    $region7: #{post_process.1} parent=1 // pred_check_branch
      %16 = sbr.rel (0) target = $region9
    $region8: #{post_process.1} parent=1 // pred_region
      _
    $region9: #{post_process.1} parent=1 // pred_fallthru
      _
    // Predicated region
    $region10: #{post_process.1} parent=1 // pred_check
      _
    $region11: #{post_process.1} parent=1 // pred_check_branch
      %18 = sbr.rel (0) target = $region13
    $region12: #{post_process.1} parent=1 // pred_region
      _
    $region13: #{post_process.1} parent=1 // pred_fallthru
      _
    %v19 = vld [vmem:[%s0] sm:$0xf]
    %v20 = vld [vmem:[%s0 + $0x4] sm:$0xf]
    %v21 = vld [vmem:[%s0 + $0x8] sm:$0xf]
    %v22 = vld [vmem:[%s0 + $0xc] sm:$0xf]
    %v23 = vld [vmem:[%s0 + $0x10] sm:$0xf]
    %v24 = vld [vmem:[%s0 + $0x14] sm:$0xf]
    %v25 = vld [vmem:[%s0 + $0x18] sm:$0xf]
    %v26 = vld [vmem:[%s0 + $0x1c] sm:$0xf]
    %v27 = vunpack.c.l.bf16 %v19
    %v28 = vunpack.c.l.bf16 %v20
    %v29 = vunpack.c.l.bf16 %v21
    %v30 = vunpack.c.l.bf16 %v22
    %v31 = vunpack.c.l.bf16 %v23
    %v32 = vunpack.c.l.bf16 %v24
    %v33 = vunpack.c.l.bf16 %v25
    %v34 = vunpack.c.l.bf16 %v26
    %vm35 = vcmask 64512
    %v36 = vsel %vm35, %v27, -inf
    %v37 = vsel %vm35, %v28, -inf
    %v38 = vsel %vm35, %v29, -inf
    %v39 = vmax.f32 %v36, %v38
    %v40 = vsel %vm35, %v30, -inf
    %v41 = vmax.f32 %v37, %v40
    %v42 = vmax.f32 %v39, %v41
    %v43 = vrot.slane %v42, 4
    %v44 = vmax.f32 %v42, %v43
    %v45 = vrot.slane %v44, 2
    %v46 = vmax.f32 %v44, %v45
    %v47 = vrot.slane %v46, 1
    %v48 = vmax.f32 %v46, %v47
    %v49 = vsel %vm35, %v31, -inf
    %v50 = vsel %vm35, %v32, -inf
    %v51 = vsel %vm35, %v33, -inf
    %v52 = vmax.f32 %v49, %v51
    %v53 = vsel %vm35, %v34, -inf
    %v54 = vmax.f32 %v50, %v53
    %v55 = vmax.f32 %v52, %v54
    %v56 = vrot.slane %v55, 4
    %v57 = vmax.f32 %v55, %v56
    %v58 = vrot.slane %v57, 2
    %v59 = vmax.f32 %v57, %v58
    %v60 = vrot.slane %v59, 1
    %v61 = vmax.f32 %v59, %v60
    %v62 = vsub.f32 %v27, %v48
    %v63 = vsub.f32 %v28, %v48
    %v64 = vsub.f32 %v29, %v48
    %v65 = vsub.f32 %v30, %v48
    %v66 = vsub.f32 %v31, %v61
    %v67 = vsub.f32 %v32, %v61
    %v68 = vsub.f32 %v33, %v61
    %v69 = vsub.f32 %v34, %v61
    %v70 = vmul.f32 %v62, 1.442695
    %v71 = vpow.pop %v70
    %v72 = vmul.f32 %v63, 1.442695
    %v73 = vpow.pop %v72
    %v74 = vmul.f32 %v64, 1.442695
    %v75 = vpow.pop %v74
    %v76 = vmul.f32 %v65, 1.442695
    %v77 = vpow.pop %v76
    %v78 = vmul.f32 %v66, 1.442695
    %v79 = vpow.pop %v78
    %v80 = vmul.f32 %v67, 1.442695
    %v81 = vpow.pop %v80
    %v82 = vmul.f32 %v68, 1.442695
    %v83 = vpow.pop %v82
    %v84 = vmul.f32 %v69, 1.442695
    %v85 = vpow.pop %v84
    %v86 = vsel %vm35, %v71, 0.0
    %v87 = vsel %vm35, %v73, 0.0
    %v88 = vadd.f32 %v86, %v87
    %v89 = vsel %vm35, %v75, 0.0
    %v90 = vadd.f32 %v88, %v89
    %v91 = vsel %vm35, %v77, 0.0
    %v92 = vadd.f32 %v90, %v91
    %v93 = vrot.slane %v92, 4
    %v94 = vadd.f32 %v92, %v93
    %v95 = vrot.slane %v94, 2
    %v96 = vadd.f32 %v94, %v95
    %v97 = vrot.slane %v96, 1
    %v98 = vadd.f32 %v96, %v97
    %v99 = vsel %vm35, %v79, 0.0
    %v100 = vsel %vm35, %v81, 0.0
    %v101 = vadd.f32 %v99, %v100
    %v102 = vsel %vm35, %v83, 0.0
    %v103 = vadd.f32 %v101, %v102
    %v104 = vsel %vm35, %v85, 0.0
    %v105 = vadd.f32 %v103, %v104
    %v106 = vrot.slane %v105, 4
    %v107 = vadd.f32 %v105, %v106
    %v108 = vrot.slane %v107, 2
    %v109 = vadd.f32 %v107, %v108
    %v110 = vrot.slane %v109, 1
    %v111 = vadd.f32 %v109, %v110
    %vm112 = vcmask 63488
    %v113 = vsel %vm112, %v30, -inf
    %v114 = vmax.f32 %v37, %v113
    %v115 = vmax.f32 %v39, %v114
    %v116 = vrot.slane %v115, 4
    %v117 = vmax.f32 %v115, %v116
    %v118 = vrot.slane %v117, 2
    %v119 = vmax.f32 %v117, %v118
    %v120 = vrot.slane %v119, 1
    %v121 = vmax.f32 %v119, %v120
    %v122 = vsel %vm112, %v34, -inf
    %v123 = vmax.f32 %v50, %v122
    %v124 = vmax.f32 %v52, %v123
    %v125 = vrot.slane %v124, 4
    %v126 = vmax.f32 %v124, %v125
    %v127 = vrot.slane %v126, 2
    %v128 = vmax.f32 %v126, %v127
    %v129 = vrot.slane %v128, 1
    %v130 = vmax.f32 %v128, %v129
    %v131 = vsub.f32 %v121, %v48
    %v132 = vsub.f32 %v130, %v61
    %v133 = vmul.f32 %v131, 1.442695
    %v134 = vpow.pop %v133
    %v135 = vmul.f32 %v132, 1.442695
    %v136 = vpow.pop %v135
    %v137 = vrcp.pop %v98
    %v138 = vmul.f32 %v98, %v137
    %v139 = vsub.f32 1.0, %v138
    %v140 = vmul.f32 %v137, %v139
    %v141 = vadd.f32 %v137, %v140
    %vm142 = vweird.f32 %v98
    %vm143 = vweird.f32 %v137
    %vm144 = vmor %vm142, %vm143
    %v145 = vsel %vm144, %v137, %v141
    %v146 = vand.u32 2147483647, %v98
    %vm147 = vcmp.eq.f32.partialorder %v146, 8.507059e+37
    %v148 = vand.u32 %v98, 2147483648
    %v149 = vor.u32 1.1754944e-38, %v148
    %v150 = vsel %vm147, %v149, %v145
    %v151 = vmul.f32 %v134, %v150
    %v152 = vrcp.pop %v111
    %v153 = vmul.f32 %v111, %v152
    %v154 = vsub.f32 1.0, %v153
    %v155 = vmul.f32 %v152, %v154
    %v156 = vadd.f32 %v152, %v155
    %vm157 = vweird.f32 %v111
    %vm158 = vweird.f32 %v152
    %vm159 = vmor %vm157, %vm158
    %v160 = vsel %vm159, %v152, %v156
    %v161 = vand.u32 2147483647, %v111
    %vm162 = vcmp.eq.f32.partialorder %v161, 8.507059e+37
    %v163 = vand.u32 %v111, 2147483648
    %v164 = vor.u32 1.1754944e-38, %v163
    %v165 = vsel %vm162, %v164, %v160
    %v166 = vmul.f32 %v136, %v165
    %v167 = vlaneseq
    %v168 = vshrl.u32 %v167, 7
    %v169 = vadd.s32 %v168, 8
    %v170 = vadd.s32 %v168, 16
    %v171 = vadd.s32 %v168, 24
    %vm172 = vcmp.ge.f32.partialorder %v27, %v121
    %vm173 = vcmp.ge.f32.partialorder %v28, %v121
    %vm174 = vcmp.ge.f32.partialorder %v29, %v121
    %vm175 = vcmp.ge.f32.partialorder %v30, %v121
    %vm176 = vcmp.ge.f32.partialorder %v31, %v130
    %vm177 = vcmp.ge.f32.partialorder %v32, %v130
    %vm178 = vcmp.ge.f32.partialorder %v33, %v130
    %vm179 = vcmp.ge.f32.partialorder %v34, %v130
    %v180 = vsel %vm172, %v168, 32
    %v181 = vsel %vm173, %v169, 32
    %v182 = vsel %vm174, %v170, 32
    %v183 = vsel %vm175, %v171, 32
    %v184 = vsel %vm176, %v168, 32
    %v185 = vsel %vm177, %v169, 32
    %v186 = vsel %vm178, %v170, 32
    %v187 = vsel %vm179, %v171, 32
    %v188 = vsel %vm35, %v180, 2147483647
    %v189 = vsel %vm35, %v181, 2147483647
    %v190 = vsel %vm35, %v182, 2147483647
    %vm191 = vcmp.lt.s32.totalorder %v188, %v190
    %v192 = vsel %vm191, %v188, %v190
    %v193 = vsel %vm112, %v183, 2147483647
    %vm194 = vcmp.lt.s32.totalorder %v189, %v193
    %v195 = vsel %vm194, %v189, %v193
    %vm196 = vcmp.lt.s32.totalorder %v192, %v195
    %v197 = vsel %vm196, %v192, %v195
    %v198 = vrot.slane %v197, 4
    %vm199 = vcmp.lt.s32.totalorder %v197, %v198
    %v200 = vsel %vm199, %v197, %v198
    %v201 = vrot.slane %v200, 2
    %vm202 = vcmp.lt.s32.totalorder %v200, %v201
    %v203 = vsel %vm202, %v200, %v201
    %v204 = vrot.slane %v203, 1
    %vm205 = vcmp.lt.s32.totalorder %v203, %v204
    %v206 = vsel %vm205, %v203, %v204
    %v207 = vsel %vm35, %v184, 2147483647
    %v208 = vsel %vm35, %v185, 2147483647
    %v209 = vsel %vm35, %v186, 2147483647
    %vm210 = vcmp.lt.s32.totalorder %v207, %v209
    %v211 = vsel %vm210, %v207, %v209
    %v212 = vsel %vm112, %v187, 2147483647
    %vm213 = vcmp.lt.s32.totalorder %v208, %v212
    %v214 = vsel %vm213, %v208, %v212
    %vm215 = vcmp.lt.s32.totalorder %v211, %v214
    %v216 = vsel %vm215, %v211, %v214
    %v217 = vrot.slane %v216, 4
    %vm218 = vcmp.lt.s32.totalorder %v216, %v217
    %v219 = vsel %vm218, %v216, %v217
    %v220 = vrot.slane %v219, 2
    %vm221 = vcmp.lt.s32.totalorder %v219, %v220
    %v222 = vsel %vm221, %v219, %v220
    %v223 = vrot.slane %v222, 1
    %vm224 = vcmp.lt.s32.totalorder %v222, %v223
    %v225 = vsel %vm224, %v222, %v223
    %vm226 = vcmask 57344
    %227 = vst.msk [vmem:[#allocation2] sm:$0x1] %vm226, %v151
    %228 = vst.msk [vmem:[#allocation2 + $0x1] sm:$0x1] %vm226, %v166
    %229 = vst.msk [vmem:[#allocation4] sm:$0x1] %vm226, %v206
    %230 = vst.msk [vmem:[#allocation4 + $0x1] sm:$0x1] %vm226, %v225
    %v231 = vld [vmem:[%s1] sm:$0xff]
    %v232 = vld [vmem:[%s1 + $0x8] sm:$0xff]
    %v233 = vld [vmem:[%s2] sm:$0x1]
    %v234 = vld [vmem:[%s2 + $0x1] sm:$0x1]
    %v235 = vmul.f32 %v231, 0.5
    %v236 = vmul.f32 %v232, 0.5
    %239 = vrot.lane.b32.xlu0 %v235, 126
    %v240 = vpop.permute.xlu0 %239
    %241 = vrot.lane.b32.xlu0 %v236, 126
    %v242 = vpop.permute.xlu0 %241
    %v245 = vsub.f32 %v231, %v240
    %v246 = vsub.f32 %v232, %v242
    %v249 = vperm.slane %v233, 0
    %v250 = vperm.slane %v234, 0
    %251 = vrot.lane.b32.xlu0 %v249, 127
    %v252 = vpop.permute.xlu0 %251
    %253 = vrot.lane.b32.xlu0 %v250, 127
    %v254 = vpop.permute.xlu0 %253
    %v257 = vmul.f32 %v245, %v252
    %v258 = vmul.f32 %v246, %v254
    %vm259 = vcmask 7168
    %260 = vst.msk [vmem:[%s5] sm:$0xff] %vm259, %v257
    %261 = vst.msk [vmem:[%s5 + $0x8] sm:$0xff] %vm259, %v258
    %262 = vrot.lane.b32.xlu0 %v249, 1
    %v263 = vpop.permute.xlu0 %262
    %264 = vrot.lane.b32.xlu0 %v250, 1
    %v265 = vpop.permute.xlu0 %264
    %v268 = vmul.f32 %v245, %v263
    %v269 = vmul.f32 %v246, %v265
    %vm270 = vcmask 15368
    %271 = vst.msk [vmem:[%s5] sm:$0xff] %vm270, %v268
    %272 = vst.msk [vmem:[%s5 + $0x8] sm:$0xff] %vm270, %v269
    %v273 = vadd.f32 %v231, %v240
    %v274 = vadd.f32 %v232, %v242
    %v275 = vmul.f32 %v273, %v252
    %v276 = vmul.f32 %v274, %v254
    %279 = vrot.lane.b32.xlu0 %v275, 2
    %v280 = vpop.permute.xlu0 %279
    %281 = vrot.lane.b32.xlu0 %v276, 2
    %v282 = vpop.permute.xlu0 %281
    %vm285 = vcmask 23568
    %286 = vst.msk [vmem:[%s5] sm:$0xff] %vm285, %v280
    %287 = vst.msk [vmem:[%s5 + $0x8] sm:$0xff] %vm285, %v282
    %v288 = vmul.f32 %v273, %v263
    %v289 = vmul.f32 %v274, %v265
    %292 = vrot.lane.b32.xlu0 %v288, 2
    %v293 = vpop.permute.xlu0 %292
    %294 = vrot.lane.b32.xlu0 %v289, 2
    %v295 = vpop.permute.xlu0 %294
    %vm298 = vcmask 31768
    %299 = vst.msk [vmem:[%s5] sm:$0xff] %vm298, %v293
    %300 = vst.msk [vmem:[%s5 + $0x8] sm:$0xff] %vm298, %v295
    // Predicated region
    $region14: #{post_process.1} parent=1 // pred_check
      _
    $region15: #{post_process.1} parent=1 // pred_check_branch
      %302 = sbr.rel (0) target = $region17
    $region16: #{post_process.1} parent=1 // pred_region
      %304 = vsyncadd [#allocation3], 0
      %s305 = sshll.u32 [#allocation2], 4
      %s306 = int_to_ptr.vmem [resolvable:$true] %s305
      %s307 = sshll.u32 %s3, 4
      %s308 = int_to_ptr.hbm [resolvable:$true] %s307
      %313 = dma.vmem_to_hbm [thread:$0]  %s306, 32, %s308, [#allocation3], 16, 16, 1
    $region17: #{post_process.1} parent=1 // pred_fallthru
      _
    // Predicated region
    $region18: #{post_process.1} parent=1 // pred_check
      _
    $region19: #{post_process.1} parent=1 // pred_check_branch
      %315 = sbr.rel (0) target = $region21
    $region20: #{post_process.1} parent=1 // pred_region
      %317 = vsyncadd [#allocation5], 0
      %s318 = sshll.u32 [#allocation4], 4
      %s319 = int_to_ptr.vmem [resolvable:$true] %s318
      %s320 = sshll.u32 %s4, 4
      %s321 = int_to_ptr.hbm [resolvable:$true] %s320
      %326 = dma.vmem_to_hbm [thread:$0]  %s319, 32, %s321, [#allocation5], 16, 16, 1
    $region21: #{post_process.1} parent=1 // pred_fallthru
      _
    // Predicated region
    $region22: #{post_process.1} parent=1 // pred_check
      _
    $region23: #{post_process.1} parent=1 // pred_check_branch
      %328 = sbr.rel (0) target = $region25
    $region24: #{post_process.1} parent=1 // pred_region
      _
    $region25: #{post_process.1} parent=1 // pred_fallthru
      _
    // Predicated region
    $region26: #{post_process.1} parent=1 // pred_check
      _
    $region27: #{post_process.1} parent=1 // pred_check_branch
      %330 = sbr.rel (0) target = $region29
    $region28: #{post_process.1} parent=1 // pred_region
      %332 = dma.done [#allocation3], 32
    $region29: #{post_process.1} parent=1 // pred_fallthru
      _
    // Predicated region
    $region30: #{post_process.1} parent=1 // pred_check
      _
    $region31: #{post_process.1} parent=1 // pred_check_branch
      %334 = sbr.rel (0) target = $region33
    $region32: #{post_process.1} parent=1 // pred_region
      %336 = dma.done [#allocation5], 32
    $region33: #{post_process.1} parent=1 // pred_fallthru
      _
    // Predicated region
    $region34: #{post_process.1} parent=1 // pred_check
      _
    $region35: #{post_process.1} parent=1 // pred_check_branch
      %338 = sbr.rel (0) target = $region37
    $region36: #{post_process.1} parent=1 // pred_region
      _
    $region37: #{post_process.1} parent=1 // pred_fallthru
      _
    %339 = vsyncpa [#allocation3], 1
    %340 = vsyncpa [#allocation5], 1

</llo_original>
